<compile_context>
chip_gen: v7x
topology: tpu7x:2x2x1
jax: 0.10.0
libtpu: 0.0.40
codegen_flags: <defaults>
</compile_context>

<pallas_src>
import jax
import jax.numpy as jnp
from jax import lax
from jax.experimental import pallas as pl
from jax.experimental.pallas import tpu as pltpu

BN_EPS = 1e-5
NEG_INF = -1e30  # finite "-inf" for padded-class biases (avoids inf arithmetic)


def _round_up(x, m):
    return ((x + m - 1) // m) * m


def _classifier_kernel(x_ref, w1_ref, b1_ref, w2_ref, b2_ref, w3_ref, b3_ref,
                       logits_ref, probs_ref):
    # x tile and weights are bf16; dots accumulate in f32 on the MXU; biases are f32.
    x = x_ref[...]

    # ---- block 1: (BN-folded) Linear -> ReLU -> Dropout(identity) ----
    h = jnp.dot(x, w1_ref[...], preferred_element_type=jnp.float32) + b1_ref[...]
    h = jnp.maximum(h, 0.0).astype(jnp.bfloat16)
    # TODO(synk): Dropout(0.5) is identity here (eval mode); train-mode masking would
    # use pltpu.prng_seed / pltpu.stateful_bernoulli.

    # ---- block 2: (BN-folded) Linear -> ReLU -> Dropout(identity) ----
    h = jnp.dot(h, w2_ref[...], preferred_element_type=jnp.float32) + b2_ref[...]
    h = jnp.maximum(h, 0.0).astype(jnp.bfloat16)

    # ---- final Linear (class dim padded to a lane-dense 128 multiple) ----
    logits = jnp.dot(h, w3_ref[...], preferred_element_type=jnp.float32) + b3_ref[...]
    logits_ref[...] = logits.astype(logits_ref.dtype)

    # ---- stable softmax over the class dim; padded classes (-1e30) exp to 0 ----
    m = jnp.max(logits, axis=1, keepdims=True)
    e = jnp.exp(logits - m)
    denom = jnp.sum(e, axis=1, keepdims=True)
    probs_ref[...] = (e * pl.reciprocal(denom, approx=True)).astype(probs_ref.dtype)


def init_classifier_params(key, input_dim, width, class_num, dtype=jnp.float32):
    """Matches the PyTorch __init__: Linear weights ~ N(0, 0.01), biases = 0,
    BN gamma=1 beta=0, running mean/var = 0/1.  Linear weights are stored
    pre-transposed as (in_features, out_features)."""
    k1, k2, k3 = jax.random.split(key, 3)
    return {
        "w1": jax.random.normal(k1, (input_dim, width), dtype) * 0.01,
        "b1": jnp.zeros((1, width), dtype),
        "g1": jnp.ones((1, width), dtype),
        "be1": jnp.zeros((1, width), dtype),
        "m1": jnp.zeros((1, width), dtype),
        "v1": jnp.ones((1, width), dtype),
        "w2": jax.random.normal(k2, (width, width), dtype) * 0.01,
        "b2": jnp.zeros((1, width), dtype),
        "g2": jnp.ones((1, width), dtype),
        "be2": jnp.zeros((1, width), dtype),
        "m2": jnp.zeros((1, width), dtype),
        "v2": jnp.ones((1, width), dtype),
        "w3": jax.random.normal(k3, (width, class_num), dtype) * 0.01,
        "b3": jnp.zeros((1, class_num), dtype),
    }


@jax.jit
def classifier_forward(x, params):
    n, d = x.shape
    width = params["w1"].shape[1]
    c = params["w3"].shape[1]

    # ---- fold BatchNorm (eval) into the preceding Linear ----
    def fold(w, b, g, be, m, v):
        scale = g * lax.rsqrt(v + BN_EPS)          # (1, out)
        return w * scale, (b - m) * scale + be

    w1f, b1f = fold(params["w1"], params["b1"], params["g1"], params["be1"],
                    params["m1"], params["v1"])
    w2f, b2f = fold(params["w2"], params["b2"], params["g2"], params["be2"],
                    params["m2"], params["v2"])

    # ---- lane-dense class dim: pad 31 -> 128 (zero weights, -1e30 bias) ----
    c_pad = max(128, _round_up(c, 128))
    w3p = jnp.pad(params["w3"], ((0, 0), (0, c_pad - c)))
    b3p = jnp.pad(params["b3"], ((0, 0), (0, c_pad - c)), constant_values=NEG_INF)

    # ---- batch tiling (tile is a multiple of 8 sublanes; pad N up if needed) ----
    tile_n = min(256, _round_up(n, 8))
    n_pad = _round_up(n, tile_n)
    xp = jnp.pad(x, ((0, n_pad - n), (0, 0))) if n_pad != n else x

    # ---- bf16 operands for the MXU, f32 biases / accumulation ----
    xb = xp.astype(jnp.bfloat16)
    w1b = w1f.astype(jnp.bfloat16)
    w2b = w2f.astype(jnp.bfloat16)
    w3b = w3p.astype(jnp.bfloat16)
    b1f = b1f.astype(jnp.float32)
    b2f = b2f.astype(jnp.float32)
    b3p = b3p.astype(jnp.float32)

    grid = (n_pad // tile_n,)

    def resident(a):
        # whole-array block, constant index -> stays in VMEM across all grid steps
        return pl.BlockSpec(a.shape, lambda i: (0,) * a.ndim)

    in_specs = [
        pl.BlockSpec((tile_n, d), lambda i: (i, 0)),   # x tile (pipelined)
        resident(w1b), resident(b1f),
        resident(w2b), resident(b2f),
        resident(w3b), resident(b3p),
    ]
    out_specs = (
        pl.BlockSpec((tile_n, c_pad), lambda i: (i, 0)),
        pl.BlockSpec((tile_n, c_pad), lambda i: (i, 0)),
    )

    flops = 2 * n_pad * (d * width + width * width + width * c_pad)
    bytes_accessed = (xb.size * 2 + w1b.size * 2 + w2b.size * 2 + w3b.size * 2
                      + b1f.size * 4 + b2f.size * 4 + b3p.size * 4
                      + 2 * n_pad * c_pad * 4)
    cost = pl.CostEstimate(flops=flops, transcendentals=n_pad * c_pad,
                           bytes_accessed=bytes_accessed)

    logits_p, probs_p = pl.pallas_call(
        _classifier_kernel,
        out_shape=(
            jax.ShapeDtypeStruct((n_pad, c_pad), jnp.float32),
            jax.ShapeDtypeStruct((n_pad, c_pad), jnp.float32),
        ),
        grid=grid,
        in_specs=in_specs,
        out_specs=out_specs,
        compiler_params=pltpu.CompilerParams(
            dimension_semantics=("parallel",),
            vmem_limit_bytes=48 << 20,
        ),
        cost_estimate=cost,
    )(xb, w1b, b1f, w2b, b2f, w3b, b3p)

    # strip batch padding and class padding
    return logits_p[:n, :c], probs_p[:n, :c]


if __name__ == "__main__":
    # Small, shape-consistent example (module defaults are input_dim=2048,
    # width=1024, class_num=31; scaled down but class_num kept at 31).
    batch, input_dim, width, class_num = 16, 256, 128, 31

    key = jax.random.PRNGKey(0)
    kx, kp, kb = jax.random.split(key, 3)
    x = jax.random.normal(kx, (batch, input_dim), jnp.float32)
    params = init_classifier_params(kp, input_dim, width, class_num)

    # give the BatchNorm layers non-trivial eval statistics so the BN-folding
    # path is actually exercised by the correctness check
    ks = jax.random.split(kb, 8)
    params["g1"] = 1.0 + 0.1 * jax.random.normal(ks[0], (1, width), jnp.float32)
    params["be1"] = 0.05 * jax.random.normal(ks[1], (1, width), jnp.float32)
    params["m1"] = 0.05 * jax.random.normal(ks[2], (1, width), jnp.float32)
    params["v1"] = 1.0 + 0.2 * jax.random.uniform(ks[3], (1, width), jnp.float32)
    params["g2"] = 1.0 + 0.1 * jax.random.normal(ks[4], (1, width), jnp.float32)
    params["be2"] = 0.05 * jax.random.normal(ks[5], (1, width), jnp.float32)
    params["m2"] = 0.05 * jax.random.normal(ks[6], (1, width), jnp.float32)
    params["v2"] = 1.0 + 0.2 * jax.random.uniform(ks[7], (1, width), jnp.float32)

    logits, probs = classifier_forward(x, params)
    jax.block_until_ready((logits, probs))

    # plain-JAX f32 reference (un-folded BN, exact softmax)
    def ref(x, p):
        h = x @ p["w1"] + p["b1"]
        h = (h - p["m1"]) * lax.rsqrt(p["v1"] + BN_EPS) * p["g1"] + p["be1"]
        h = jnp.maximum(h, 0.0)
        h = h @ p["w2"] + p["b2"]
        h = (h - p["m2"]) * lax.rsqrt(p["v2"] + BN_EPS) * p["g2"] + p["be2"]
        h = jnp.maximum(h, 0.0)
        lg = h @ p["w3"] + p["b3"]
        return lg, jax.nn.softmax(lg, axis=1)

    r_logits, r_probs = ref(x, params)

    assert logits.shape == (batch, class_num)
    assert probs.shape == (batch, class_num)
    # tolerances account for bf16 matmuls + approx reciprocal in the softmax
    assert jnp.allclose(logits, r_logits, atol=2e-3, rtol=5e-2)
    assert jnp.allclose(probs, r_probs, atol=2e-3, rtol=5e-2)
    assert jnp.allclose(jnp.sum(probs, axis=1), 1.0, atol=5e-3)

    print("KERNEL_OK")
</pallas_src>

<mosaic_0001>
module attributes {stable_mosaic.version = 11 : i64} {
  func.func @_classifier_kernel(%arg0: i32, %arg1: memref<16x256xbf16, #tpu.memory_space<vmem>>, %arg2: memref<256x128xbf16, #tpu.memory_space<vmem>>, %arg3: memref<1x128xf32, #tpu.memory_space<vmem>>, %arg4: memref<128x128xbf16, #tpu.memory_space<vmem>>, %arg5: memref<1x128xf32, #tpu.memory_space<vmem>>, %arg6: memref<128x128xbf16, #tpu.memory_space<vmem>>, %arg7: memref<1x128xf32, #tpu.memory_space<vmem>>, %arg8: memref<16x128xf32, #tpu.memory_space<vmem>>, %arg9: memref<16x128xf32, #tpu.memory_space<vmem>>) attributes {dimension_semantics = [#tpu.dimension_semantics<parallel>], iteration_bounds = array<i64: 1>, scalar_prefetch = 0 : i64, scratch_operands = 0 : i64, tpu.core_type = #tpu.core_type<tc>, window_params = [{transform_indices = @transform_0, window_bounds = array<i64: 16, 256>}, {pipeline_mode = #tpu.pipeline_mode<synchronous>, transform_indices = @transform_1, window_bounds = array<i64: 256, 128>}, {pipeline_mode = #tpu.pipeline_mode<synchronous>, transform_indices = @transform_2, window_bounds = array<i64: 1, 128>}, {pipeline_mode = #tpu.pipeline_mode<synchronous>, transform_indices = @transform_3, window_bounds = array<i64: 128, 128>}, {pipeline_mode = #tpu.pipeline_mode<synchronous>, transform_indices = @transform_4, window_bounds = array<i64: 1, 128>}, {pipeline_mode = #tpu.pipeline_mode<synchronous>, transform_indices = @transform_5, window_bounds = array<i64: 128, 128>}, {pipeline_mode = #tpu.pipeline_mode<synchronous>, transform_indices = @transform_6, window_bounds = array<i64: 1, 128>}, {transform_indices = @transform_7, window_bounds = array<i64: 16, 128>}, {transform_indices = @transform_8, window_bounds = array<i64: 16, 128>}]} {
    %c0 = arith.constant 0 : index
    %c0_0 = arith.constant 0 : index
    %0 = vector.load %arg1[%c0, %c0_0] : memref<16x256xbf16, #tpu.memory_space<vmem>>, vector<16x256xbf16>
    %c0_1 = arith.constant 0 : index
    %c0_2 = arith.constant 0 : index
    %1 = vector.load %arg2[%c0_1, %c0_2] : memref<256x128xbf16, #tpu.memory_space<vmem>>, vector<256x128xbf16>
    %cst = arith.constant dense<0.000000e+00> : vector<16x128xf32>
    %2 = tpu.matmul %0, %1, %cst {dimension_numbers = #tpu.dot_dimension_numbers<[1], [0], [0], [1], [0, 0, 1, 1], [], []>} : vector<16x256xbf16>, vector<256x128xbf16>, vector<16x128xf32> -> vector<16x128xf32>
    %c0_3 = arith.constant 0 : index
    %c0_4 = arith.constant 0 : index
    %3 = vector.load %arg3[%c0_3, %c0_4] : memref<1x128xf32, #tpu.memory_space<vmem>>, vector<1x128xf32>
    %4 = vector.broadcast %3 : vector<1x128xf32> to vector<16x128xf32>
    %5 = arith.addf %2, %4 : vector<16x128xf32>
    %cst_5 = arith.constant 0.000000e+00 : f32
    %6 = vector.broadcast %cst_5 : f32 to vector<16x128xf32>
    %7 = arith.maximumf %5, %6 : vector<16x128xf32>
    %8 = arith.truncf %7 : vector<16x128xf32> to vector<16x128xbf16>
    %c0_6 = arith.constant 0 : index
    %c0_7 = arith.constant 0 : index
    %9 = vector.load %arg4[%c0_6, %c0_7] : memref<128x128xbf16, #tpu.memory_space<vmem>>, vector<128x128xbf16>
    %cst_8 = arith.constant dense<0.000000e+00> : vector<16x128xf32>
    %10 = tpu.matmul %8, %9, %cst_8 {dimension_numbers = #tpu.dot_dimension_numbers<[1], [0], [0], [1], [0, 0, 1, 1], [], []>} : vector<16x128xbf16>, vector<128x128xbf16>, vector<16x128xf32> -> vector<16x128xf32>
    %c0_9 = arith.constant 0 : index
    %c0_10 = arith.constant 0 : index
    %11 = vector.load %arg5[%c0_9, %c0_10] : memref<1x128xf32, #tpu.memory_space<vmem>>, vector<1x128xf32>
    %12 = vector.broadcast %11 : vector<1x128xf32> to vector<16x128xf32>
    %13 = arith.addf %10, %12 : vector<16x128xf32>
    %cst_11 = arith.constant 0.000000e+00 : f32
    %14 = vector.broadcast %cst_11 : f32 to vector<16x128xf32>
    %15 = arith.maximumf %13, %14 : vector<16x128xf32>
    %16 = arith.truncf %15 : vector<16x128xf32> to vector<16x128xbf16>
    %c0_12 = arith.constant 0 : index
    %c0_13 = arith.constant 0 : index
    %17 = vector.load %arg6[%c0_12, %c0_13] : memref<128x128xbf16, #tpu.memory_space<vmem>>, vector<128x128xbf16>
    %cst_14 = arith.constant dense<0.000000e+00> : vector<16x128xf32>
    %18 = tpu.matmul %16, %17, %cst_14 {dimension_numbers = #tpu.dot_dimension_numbers<[1], [0], [0], [1], [0, 0, 1, 1], [], []>} : vector<16x128xbf16>, vector<128x128xbf16>, vector<16x128xf32> -> vector<16x128xf32>
    %c0_15 = arith.constant 0 : index
    %c0_16 = arith.constant 0 : index
    %19 = vector.load %arg7[%c0_15, %c0_16] : memref<1x128xf32, #tpu.memory_space<vmem>>, vector<1x128xf32>
    %20 = vector.broadcast %19 : vector<1x128xf32> to vector<16x128xf32>
    %21 = arith.addf %18, %20 : vector<16x128xf32>
    %c0_17 = arith.constant 0 : index
    %c0_18 = arith.constant 0 : index
    %22 = vector.load %arg8[%c0_17, %c0_18] : memref<16x128xf32, #tpu.memory_space<vmem>>, vector<16x128xf32>
    tpu.vector_store %arg8[%c0_17, %c0_18], %21 {strides = array<i32>} : memref<16x128xf32, #tpu.memory_space<vmem>>, vector<16x128xf32>,
    %cst_19 = arith.constant dense<0xFF800000> : vector<16xf32>
    %23 = vector.multi_reduction <maximumf>, %21, %cst_19 [1] : vector<16x128xf32> to vector<16xf32>
    %24 = vector.shape_cast %23 : vector<16xf32> to vector<16x1xf32>
    %25 = vector.broadcast %24 : vector<16x1xf32> to vector<16x128xf32>
    %26 = arith.subf %21, %25 : vector<16x128xf32>
    %27 = math.exp %26 : vector<16x128xf32>
    %cst_20 = arith.constant dense<0.000000e+00> : vector<16xf32>
    %28 = vector.multi_reduction <add>, %27, %cst_20 [1] : vector<16x128xf32> to vector<16xf32>
    %29 = vector.shape_cast %28 : vector<16xf32> to vector<16x1xf32>
    %30 = tpu.reciprocal %29 {approx = true} : vector<16x1xf32> -> vector<16x1xf32>
    %31 = vector.broadcast %30 : vector<16x1xf32> to vector<16x128xf32>
    %32 = arith.mulf %27, %31 : vector<16x128xf32>
    %c0_21 = arith.constant 0 : index
    %c0_22 = arith.constant 0 : index
    %33 = vector.load %arg9[%c0_21, %c0_22] : memref<16x128xf32, #tpu.memory_space<vmem>>, vector<16x128xf32>
    tpu.vector_store %arg9[%c0_21, %c0_22], %32 {strides = array<i32>} : memref<16x128xf32, #tpu.memory_space<vmem>>, vector<16x128xf32>,
    return
  }
  func.func @transform_0(%arg0: i32) -> (i32, i32) {
    %c0_i32 = arith.constant 0 : i32
    %c0_i32_0 = arith.constant 0 : i32
    return %arg0, %c0_i32 : i32, i32
  }
  func.func @transform_1(%arg0: i32) -> (i32, i32) {
    %c0_i32 = arith.constant 0 : i32
    %c0_i32_0 = arith.constant 0 : i32
    %c0_i32_1 = arith.constant 0 : i32
    return %c0_i32, %c0_i32_0 : i32, i32
  }
  func.func @transform_2(%arg0: i32) -> (i32, i32) {
    %c0_i32 = arith.constant 0 : i32
    %c0_i32_0 = arith.constant 0 : i32
    %c0_i32_1 = arith.constant 0 : i32
    return %c0_i32, %c0_i32_0 : i32, i32
  }
  func.func @transform_3(%arg0: i32) -> (i32, i32) {
    %c0_i32 = arith.constant 0 : i32
    %c0_i32_0 = arith.constant 0 : i32
    %c0_i32_1 = arith.constant 0 : i32
    return %c0_i32, %c0_i32_0 : i32, i32
  }
  func.func @transform_4(%arg0: i32) -> (i32, i32) {
    %c0_i32 = arith.constant 0 : i32
    %c0_i32_0 = arith.constant 0 : i32
    %c0_i32_1 = arith.constant 0 : i32
    return %c0_i32, %c0_i32_0 : i32, i32
  }
  func.func @transform_5(%arg0: i32) -> (i32, i32) {
    %c0_i32 = arith.constant 0 : i32
    %c0_i32_0 = arith.constant 0 : i32
    %c0_i32_1 = arith.constant 0 : i32
    return %c0_i32, %c0_i32_0 : i32, i32
  }
  func.func @transform_6(%arg0: i32) -> (i32, i32) {
    %c0_i32 = arith.constant 0 : i32
    %c0_i32_0 = arith.constant 0 : i32
    %c0_i32_1 = arith.constant 0 : i32
    return %c0_i32, %c0_i32_0 : i32, i32
  }
  func.func @transform_7(%arg0: i32) -> (i32, i32) {
    %c0_i32 = arith.constant 0 : i32
    %c0_i32_0 = arith.constant 0 : i32
    return %arg0, %c0_i32 : i32, i32
  }
  func.func @transform_8(%arg0: i32) -> (i32, i32) {
    %c0_i32 = arith.constant 0 : i32
    %c0_i32_0 = arith.constant 0 : i32
    return %arg0, %c0_i32 : i32, i32
  }
}

</mosaic_0001>

<llo_original>
// kernel: classifier_forward.1
$region0: #{classifier_forward.1}
  #allocation0 [shape = 'u32[]', space=smem, size = 0x4, offset = 0x4, fixed_abs, tag = 'smem constant byte address 0x4 - core index']
  #allocation1 [shape = 'u32[144,128]{1,0:T(1,128)}', space=vmem, size = 0x12000, scoped, tag = 'internal scratch']
  %s0 = inlined_call_operand.vmem [shape: bf16[16,256], index: 0, kind: input, shape index: {}]
  %s1 = inlined_call_operand.vmem [shape: bf16[256,128], index: 1, kind: input, shape index: {}]
  %s2 = inlined_call_operand.vmem [shape: f32[1,128], index: 2, kind: input, shape index: {}]
  %s3 = inlined_call_operand.vmem [shape: bf16[128,128], index: 3, kind: input, shape index: {}]
  %s4 = inlined_call_operand.vmem [shape: f32[1,128], index: 4, kind: input, shape index: {}]
  %s5 = inlined_call_operand.vmem [shape: bf16[128,128], index: 5, kind: input, shape index: {}]
  %s6 = inlined_call_operand.vmem [shape: f32[1,128], index: 6, kind: input, shape index: {}]
  %s7 = inlined_call_operand.hbm [shape: f32[16,128], index: 7, kind: output, shape index: {0}]
  %s8 = inlined_call_operand.hbm [shape: f32[16,128], index: 8, kind: output, shape index: {1}]
  %9 = xla_tuple %s7, %s8
  %s10 = sld [smem:[#allocation0]]
  $region46: #{classifier_forward.1} parent=0
    _
  %s12 = ssub.s32 1, %s10
  %s13 = scalar_select 0, %s12, %s10
  $region1: #{classifier_forward.1} parent=0
    #allocation2 [shape = 'u8[8192]{0}', space=vmem, size = 0x2000, scoped, tag = 'output window, operand 0, single buffered']
    #allocation3 [shape = 's32[1]{0}', space=sflag, size = 0x4, scoped, tag = 'scoped memory for classifier_forward.1']
    #allocation4 [shape = 'u8[8192]{0}', space=vmem, size = 0x2000, scoped, tag = 'output window, operand 1, single buffered']
    #allocation5 [shape = 's32[1]{0}', space=sflag, size = 0x4, scoped, tag = 'scoped memory for classifier_forward.1']
    %14 = vsyncpa [#allocation3], 0
    %15 = vsyncpa [#allocation5], 0
    // Predicated region
    $region2: #{classifier_forward.1} parent=1 // pred_check
      _
    $region3: #{classifier_forward.1} parent=1 // pred_check_branch
      %17 = sbr.rel (0) target = $region5
    $region4: #{classifier_forward.1} parent=1 // pred_region
      _
    $region5: #{classifier_forward.1} parent=1 // pred_fallthru
      _
    // Predicated region
    $region6: #{classifier_forward.1} parent=1 // pred_check
      _
    $region7: #{classifier_forward.1} parent=1 // pred_check_branch
      %19 = sbr.rel (0) target = $region9
    $region8: #{classifier_forward.1} parent=1 // pred_region
      _
    $region9: #{classifier_forward.1} parent=1 // pred_fallthru
      _
    // Predicated region
    $region10: #{classifier_forward.1} parent=1 // pred_check
      _
    $region11: #{classifier_forward.1} parent=1 // pred_check_branch
      %21 = sbr.rel (0) target = $region13
    $region12: #{classifier_forward.1} parent=1 // pred_region
      _
    $region13: #{classifier_forward.1} parent=1 // pred_fallthru
      _
    // Predicated region
    $region14: #{classifier_forward.1} parent=1 // pred_check
      _
    $region15: #{classifier_forward.1} parent=1 // pred_check_branch
      %23 = sbr.rel (0) target = $region17
    $region16: #{classifier_forward.1} parent=1 // pred_region
      _
    $region17: #{classifier_forward.1} parent=1 // pred_fallthru
      _
    // Predicated region
    $region18: #{classifier_forward.1} parent=1 // pred_check
      _
    $region19: #{classifier_forward.1} parent=1 // pred_check_branch
      %25 = sbr.rel (0) target = $region21
    $region20: #{classifier_forward.1} parent=1 // pred_region
      _
    $region21: #{classifier_forward.1} parent=1 // pred_fallthru
      _
    // Predicated region
    $region22: #{classifier_forward.1} parent=1 // pred_check
      _
    $region23: #{classifier_forward.1} parent=1 // pred_check_branch
      %27 = sbr.rel (0) target = $region25
    $region24: #{classifier_forward.1} parent=1 // pred_region
      _
    $region25: #{classifier_forward.1} parent=1 // pred_fallthru
      _
    // Predicated region
    $region26: #{classifier_forward.1} parent=1 // pred_check
      _
    $region27: #{classifier_forward.1} parent=1 // pred_check_branch
      %29 = sbr.rel (0) target = $region29
    $region28: #{classifier_forward.1} parent=1 // pred_region
      _
    $region29: #{classifier_forward.1} parent=1 // pred_fallthru
      _
    %v31 = vld [vmem:[%s0] sm:$0xff]
    %v32 = vld [vmem:[%s0 + $0x8] sm:$0xff]
    %v33 = vld [vmem:[%s1] sm:$0xf]
    %v34 = vld [vmem:[%s1 + $0x4] sm:$0xf]
    %v35 = vld [vmem:[%s1 + $0x8] sm:$0xf]
    %v36 = vld [vmem:[%s1 + $0xc] sm:$0xf]
    %v37 = vld [vmem:[%s1 + $0x10] sm:$0xf]
    %v38 = vld [vmem:[%s1 + $0x14] sm:$0xf]
    %v39 = vld [vmem:[%s1 + $0x18] sm:$0xf]
    %v40 = vld [vmem:[%s1 + $0x1c] sm:$0xf]
    %v41 = vld [vmem:[%s1 + $0x20] sm:$0xf]
    %v42 = vld [vmem:[%s1 + $0x24] sm:$0xf]
    %v43 = vld [vmem:[%s1 + $0x28] sm:$0xf]
    %v44 = vld [vmem:[%s1 + $0x2c] sm:$0xf]
    %v45 = vld [vmem:[%s1 + $0x30] sm:$0xf]
    %v46 = vld [vmem:[%s1 + $0x34] sm:$0xf]
    %v47 = vld [vmem:[%s1 + $0x38] sm:$0xf]
    %v48 = vld [vmem:[%s1 + $0x3c] sm:$0xf]
    %v49 = vld [vmem:[%s1 + $0x40] sm:$0xf]
    %v50 = vld [vmem:[%s1 + $0x44] sm:$0xf]
    %v51 = vld [vmem:[%s1 + $0x48] sm:$0xf]
    %v52 = vld [vmem:[%s1 + $0x4c] sm:$0xf]
    %v53 = vld [vmem:[%s1 + $0x50] sm:$0xf]
    %v54 = vld [vmem:[%s1 + $0x54] sm:$0xf]
    %v55 = vld [vmem:[%s1 + $0x58] sm:$0xf]
    %v56 = vld [vmem:[%s1 + $0x5c] sm:$0xf]
    %v57 = vld [vmem:[%s1 + $0x60] sm:$0xf]
    %v58 = vld [vmem:[%s1 + $0x64] sm:$0xf]
    %v59 = vld [vmem:[%s1 + $0x68] sm:$0xf]
    %v60 = vld [vmem:[%s1 + $0x6c] sm:$0xf]
    %v61 = vld [vmem:[%s1 + $0x70] sm:$0xf]
    %v62 = vld [vmem:[%s1 + $0x74] sm:$0xf]
    %v63 = vld [vmem:[%s1 + $0x78] sm:$0xf]
    %v64 = vld [vmem:[%s1 + $0x7c] sm:$0xf]
    %v65 = vld [vmem:[%s2] sm:$0x1]
    %v67 = vlaneseq
    %v68 = vshrl.u32 %v67, 7
    %v69 = vsub.s32 0, %v68
    %v70 = vrot.slane %v65, %v69
    %v74 = vunpack.c.l.b16 %v31
    %v75 = vunpack.c.h.b16 %v31
    %v76 = vunpack.c.l.b16 %v32
    %v77 = vunpack.c.h.b16 %v32
    %v78 = vpack.c.b16 %v76, %v74
    %v79 = vpack.c.b16 %v77, %v75
    %v114 = vunpack.c.l.b16 %v33
    %v115 = vunpack.c.l.b16 %v34
    %v116 = vunpack.c.l.b16 %v35
    %v117 = vunpack.c.l.b16 %v36
    %v118 = vunpack.c.l.b16 %v37
    %v119 = vunpack.c.l.b16 %v38
    %v120 = vunpack.c.l.b16 %v39
    %v121 = vunpack.c.l.b16 %v40
    %v122 = vunpack.c.l.b16 %v41
    %v123 = vunpack.c.l.b16 %v42
    %v124 = vunpack.c.l.b16 %v43
    %v125 = vunpack.c.l.b16 %v44
    %v126 = vunpack.c.l.b16 %v45
    %v127 = vunpack.c.l.b16 %v46
    %v128 = vunpack.c.l.b16 %v47
    %v129 = vunpack.c.l.b16 %v48
    %v130 = vunpack.c.l.b16 %v49
    %v131 = vunpack.c.l.b16 %v50
    %v132 = vunpack.c.l.b16 %v51
    %v133 = vunpack.c.l.b16 %v52
    %v134 = vunpack.c.l.b16 %v53
    %v135 = vunpack.c.l.b16 %v54
    %v136 = vunpack.c.l.b16 %v55
    %v137 = vunpack.c.l.b16 %v56
    %v138 = vunpack.c.l.b16 %v57
    %v139 = vunpack.c.l.b16 %v58
    %v140 = vunpack.c.l.b16 %v59
    %v141 = vunpack.c.l.b16 %v60
    %v142 = vunpack.c.l.b16 %v61
    %v143 = vunpack.c.l.b16 %v62
    %v144 = vunpack.c.l.b16 %v63
    %v145 = vunpack.c.l.b16 %v64
    %v146 = vpack.c.b16 %v115, %v114
    %v147 = vpack.c.b16 %v117, %v116
    %v148 = vpack.c.b16 %v119, %v118
    %v149 = vpack.c.b16 %v121, %v120
    %v150 = vpack.c.b16 %v123, %v122
    %v151 = vpack.c.b16 %v125, %v124
    %v152 = vpack.c.b16 %v127, %v126
    %v153 = vpack.c.b16 %v129, %v128
    %v154 = vpack.c.b16 %v131, %v130
    %v155 = vpack.c.b16 %v133, %v132
    %v156 = vpack.c.b16 %v135, %v134
    %v157 = vpack.c.b16 %v137, %v136
    %v158 = vpack.c.b16 %v139, %v138
    %v159 = vpack.c.b16 %v141, %v140
    %v160 = vpack.c.b16 %v143, %v142
    %v161 = vpack.c.b16 %v145, %v144
    %178 = vmatprep.subr.bf16.mxu0 0
    %179 = vmatpush1.bf16.msra.mxu0 %v146
    %180 = vmatprep.subr.bf16.mxu0 0
    %181 = vmatpush1.bf16.msra.mxu0 %v147
    %182 = vmatprep.subr.bf16.mxu0 0
    %183 = vmatpush1.bf16.msra.mxu0 %v148
    %184 = vmatprep.subr.bf16.mxu0 0
    %185 = vmatpush1.bf16.msra.mxu0 %v149
    %186 = vmatprep.subr.bf16.mxu0 0
    %187 = vmatpush1.bf16.msra.mxu0 %v150
    %188 = vmatprep.subr.bf16.mxu0 0
    %189 = vmatpush1.bf16.msra.mxu0 %v151
    %190 = vmatprep.subr.bf16.mxu0 0
    %191 = vmatpush1.bf16.msra.mxu0 %v152
    %192 = vmatprep.subr.bf16.mxu0 0
    %193 = vmatpush1.bf16.msra.mxu0 %v153
    %194 = vmatprep.subr.bf16.mxu0 0
    %195 = vmatpush1.bf16.msra.mxu0 %v154
    %196 = vmatprep.subr.bf16.mxu0 0
    %197 = vmatpush1.bf16.msra.mxu0 %v155
    %198 = vmatprep.subr.bf16.mxu0 0
    %199 = vmatpush1.bf16.msra.mxu0 %v156
    %200 = vmatprep.subr.bf16.mxu0 0
    %201 = vmatpush1.bf16.msra.mxu0 %v157
    %202 = vmatprep.subr.bf16.mxu0 0
    %203 = vmatpush1.bf16.msra.mxu0 %v158
    %204 = vmatprep.subr.bf16.mxu0 0
    %205 = vmatpush1.bf16.msra.mxu0 %v159
    %206 = vmatprep.subr.bf16.mxu0 0
    %207 = vmatpush1.bf16.msra.mxu0 %v160
    %208 = vmatprep.subr.bf16.mxu0 0
    %209 = vmatpush1.bf16.msra.mxu0 %v161
    %210 = vmatprep.mubr.bf16.mxu0 %v79
    %211 = vmatmul.mubr.bf16.gmra.mrb[0].mxu0 %v78
    %v212 = vpop.f32.mrb[0].mxu0
    %v213 = vadd.f32 %v70, %v212
    %v214 = vpop.f32.mrb[0].mxu0
    %v215 = vpop.f32.mrb[0].mxu0
    %v216 = vadd.f32 %v70, %v215
    %v217 = vpop.f32.mrb[0].mxu0
    %218 = vdwg.mxu0
    %v219 = vmax.f32 %v213, 0.0
    %v220 = vmax.f32 %v216, 0.0
    %v221 = vpack.c.bf16 %v220, %v219
    %v222 = vld [vmem:[%s3] sm:$0xf]
    %v223 = vld [vmem:[%s3 + $0x4] sm:$0xf]
    %v224 = vld [vmem:[%s3 + $0x8] sm:$0xf]
    %v225 = vld [vmem:[%s3 + $0xc] sm:$0xf]
    %v226 = vld [vmem:[%s3 + $0x10] sm:$0xf]
    %v227 = vld [vmem:[%s3 + $0x14] sm:$0xf]
    %v228 = vld [vmem:[%s3 + $0x18] sm:$0xf]
    %v229 = vld [vmem:[%s3 + $0x1c] sm:$0xf]
    %v230 = vld [vmem:[%s3 + $0x20] sm:$0xf]
    %v231 = vld [vmem:[%s3 + $0x24] sm:$0xf]
    %v232 = vld [vmem:[%s3 + $0x28] sm:$0xf]
    %v233 = vld [vmem:[%s3 + $0x2c] sm:$0xf]
    %v234 = vld [vmem:[%s3 + $0x30] sm:$0xf]
    %v235 = vld [vmem:[%s3 + $0x34] sm:$0xf]
    %v236 = vld [vmem:[%s3 + $0x38] sm:$0xf]
    %v237 = vld [vmem:[%s3 + $0x3c] sm:$0xf]
    %v238 = vld [vmem:[%s4] sm:$0x1]
    %v240 = vlaneseq
    %v241 = vshrl.u32 %v240, 7
    %v242 = vsub.s32 0, %v241
    %v243 = vrot.slane %v238, %v242
    %v261 = vunpack.c.l.b16 %v222
    %v262 = vunpack.c.l.b16 %v223
    %v263 = vunpack.c.l.b16 %v224
    %v264 = vunpack.c.l.b16 %v225
    %v265 = vunpack.c.l.b16 %v226
    %v266 = vunpack.c.l.b16 %v227
    %v267 = vunpack.c.l.b16 %v228
    %v268 = vunpack.c.l.b16 %v229
    %v269 = vunpack.c.l.b16 %v230
    %v270 = vunpack.c.l.b16 %v231
    %v271 = vunpack.c.l.b16 %v232
    %v272 = vunpack.c.l.b16 %v233
    %v273 = vunpack.c.l.b16 %v234
    %v274 = vunpack.c.l.b16 %v235
    %v275 = vunpack.c.l.b16 %v236
    %v276 = vunpack.c.l.b16 %v237
    %v277 = vpack.c.b16 %v262, %v261
    %v278 = vpack.c.b16 %v264, %v263
    %v279 = vpack.c.b16 %v266, %v265
    %v280 = vpack.c.b16 %v268, %v267
    %v281 = vpack.c.b16 %v270, %v269
    %v282 = vpack.c.b16 %v272, %v271
    %v283 = vpack.c.b16 %v274, %v273
    %v284 = vpack.c.b16 %v276, %v275
    %293 = vmatprep.subr.bf16.mxu0 0
    %294 = vmatpush1.bf16.msra.mxu0 %v277
    %295 = vmatprep.subr.bf16.mxu0 0
    %296 = vmatpush1.bf16.msra.mxu0 %v278
    %297 = vmatprep.subr.bf16.mxu0 0
    %298 = vmatpush1.bf16.msra.mxu0 %v279
    %299 = vmatprep.subr.bf16.mxu0 0
    %300 = vmatpush1.bf16.msra.mxu0 %v280
    %301 = vmatprep.subr.bf16.mxu0 0
    %302 = vmatpush1.bf16.msra.mxu0 %v281
    %303 = vmatprep.subr.bf16.mxu0 0
    %304 = vmatpush1.bf16.msra.mxu0 %v282
    %305 = vmatprep.subr.bf16.mxu0 0
    %306 = vmatpush1.bf16.msra.mxu0 %v283
    %307 = vmatprep.subr.bf16.mxu0 0
    %308 = vmatpush1.bf16.msra.mxu0 %v284
    %309 = vmatprep.subr.bf16.mxu0 0
    %310 = vmatpush1.bf16.msra.mxu0 0
    %311 = vmatprep.subr.bf16.mxu0 0
    %312 = vmatpush1.bf16.msra.mxu0 0
    %313 = vmatprep.subr.bf16.mxu0 0
    %314 = vmatpush1.bf16.msra.mxu0 0
    %315 = vmatprep.subr.bf16.mxu0 0
    %316 = vmatpush1.bf16.msra.mxu0 0
    %317 = vmatprep.subr.bf16.mxu0 0
    %318 = vmatpush1.bf16.msra.mxu0 0
    %319 = vmatprep.subr.bf16.mxu0 0
    %320 = vmatpush1.bf16.msra.mxu0 0
    %321 = vmatprep.subr.bf16.mxu0 0
    %322 = vmatpush1.bf16.msra.mxu0 0
    %323 = vmatprep.subr.bf16.mxu0 0
    %324 = vmatpush1.bf16.msra.mxu0 0
    %325 = vmatprep.mubr.bf16.mxu0 0
    %326 = vmatmul.mubr.bf16.gmra.mrb[0].mxu0 %v221
    %v327 = vpop.f32.mrb[0].mxu0
    %v328 = vadd.f32 %v243, %v327
    %v329 = vpop.f32.mrb[0].mxu0
    %v330 = vpop.f32.mrb[0].mxu0
    %v331 = vadd.f32 %v243, %v330
    %v332 = vpop.f32.mrb[0].mxu0
    %333 = vdwg.mxu0
    %v334 = vmax.f32 %v328, 0.0
    %v335 = vmax.f32 %v331, 0.0
    %v336 = vpack.c.bf16 %v335, %v334
    %v337 = vld [vmem:[%s5] sm:$0xf]
    %v338 = vld [vmem:[%s5 + $0x4] sm:$0xf]
    %v339 = vld [vmem:[%s5 + $0x8] sm:$0xf]
    %v340 = vld [vmem:[%s5 + $0xc] sm:$0xf]
    %v341 = vld [vmem:[%s5 + $0x10] sm:$0xf]
    %v342 = vld [vmem:[%s5 + $0x14] sm:$0xf]
    %v343 = vld [vmem:[%s5 + $0x18] sm:$0xf]
    %v344 = vld [vmem:[%s5 + $0x1c] sm:$0xf]
    %v345 = vld [vmem:[%s5 + $0x20] sm:$0xf]
    %v346 = vld [vmem:[%s5 + $0x24] sm:$0xf]
    %v347 = vld [vmem:[%s5 + $0x28] sm:$0xf]
    %v348 = vld [vmem:[%s5 + $0x2c] sm:$0xf]
    %v349 = vld [vmem:[%s5 + $0x30] sm:$0xf]
    %v350 = vld [vmem:[%s5 + $0x34] sm:$0xf]
    %v351 = vld [vmem:[%s5 + $0x38] sm:$0xf]
    %v352 = vld [vmem:[%s5 + $0x3c] sm:$0xf]
    %v353 = vld [vmem:[%s6] sm:$0x1]
    %v355 = vlaneseq
    %v356 = vshrl.u32 %v355, 7
    %v357 = vsub.s32 0, %v356
    %v358 = vrot.slane %v353, %v357
    %v376 = vunpack.c.l.b16 %v337
    %v377 = vunpack.c.l.b16 %v338
    %v378 = vunpack.c.l.b16 %v339
    %v379 = vunpack.c.l.b16 %v340
    %v380 = vunpack.c.l.b16 %v341
    %v381 = vunpack.c.l.b16 %v342
    %v382 = vunpack.c.l.b16 %v343
    %v383 = vunpack.c.l.b16 %v344
    %v384 = vunpack.c.l.b16 %v345
    %v385 = vunpack.c.l.b16 %v346
    %v386 = vunpack.c.l.b16 %v347
    %v387 = vunpack.c.l.b16 %v348
    %v388 = vunpack.c.l.b16 %v349
    %v389 = vunpack.c.l.b16 %v350
    %v390 = vunpack.c.l.b16 %v351
    %v391 = vunpack.c.l.b16 %v352
    %v392 = vpack.c.b16 %v377, %v376
    %v393 = vpack.c.b16 %v379, %v378
    %v394 = vpack.c.b16 %v381, %v380
    %v395 = vpack.c.b16 %v383, %v382
    %v396 = vpack.c.b16 %v385, %v384
    %v397 = vpack.c.b16 %v387, %v386
    %v398 = vpack.c.b16 %v389, %v388
    %v399 = vpack.c.b16 %v391, %v390
    %408 = vmatprep.subr.bf16.mxu0 0
    %409 = vmatpush1.bf16.msra.mxu0 %v392
    %410 = vmatprep.subr.bf16.mxu0 0
    %411 = vmatpush1.bf16.msra.mxu0 %v393
    %412 = vmatprep.subr.bf16.mxu0 0
    %413 = vmatpush1.bf16.msra.mxu0 %v394
    %414 = vmatprep.subr.bf16.mxu0 0
    %415 = vmatpush1.bf16.msra.mxu0 %v395
    %416 = vmatprep.subr.bf16.mxu0 0
    %417 = vmatpush1.bf16.msra.mxu0 %v396
    %418 = vmatprep.subr.bf16.mxu0 0
    %419 = vmatpush1.bf16.msra.mxu0 %v397
    %420 = vmatprep.subr.bf16.mxu0 0
    %421 = vmatpush1.bf16.msra.mxu0 %v398
    %422 = vmatprep.subr.bf16.mxu0 0
    %423 = vmatpush1.bf16.msra.mxu0 %v399
    %424 = vmatprep.subr.bf16.mxu0 0
    %425 = vmatpush1.bf16.msra.mxu0 0
    %426 = vmatprep.subr.bf16.mxu0 0
    %427 = vmatpush1.bf16.msra.mxu0 0
    %428 = vmatprep.subr.bf16.mxu0 0
    %429 = vmatpush1.bf16.msra.mxu0 0
    %430 = vmatprep.subr.bf16.mxu0 0
    %431 = vmatpush1.bf16.msra.mxu0 0
    %432 = vmatprep.subr.bf16.mxu0 0
    %433 = vmatpush1.bf16.msra.mxu0 0
    %434 = vmatprep.subr.bf16.mxu0 0
    %435 = vmatpush1.bf16.msra.mxu0 0
    %436 = vmatprep.subr.bf16.mxu0 0
    %437 = vmatpush1.bf16.msra.mxu0 0
    %438 = vmatprep.subr.bf16.mxu0 0
    %439 = vmatpush1.bf16.msra.mxu0 0
    %440 = vmatprep.mubr.bf16.mxu0 0
    %441 = vmatmul.mubr.bf16.gmra.mrb[0].mxu0 %v336
    %v442 = vpop.f32.mrb[0].mxu0
    %v443 = vadd.f32 %v358, %v442
    %v444 = vpop.f32.mrb[0].mxu0
    %v445 = vpop.f32.mrb[0].mxu0
    %v446 = vadd.f32 %v358, %v445
    %v447 = vpop.f32.mrb[0].mxu0
    %448 = vdwg.mxu0
    %449 = vst [vmem:[#allocation2] sm:$0xff] %v443
    %450 = vst [vmem:[#allocation2 + $0x8] sm:$0xff] %v446
    %451 = vmax.xlane.f32.xlu0 %v443
    %v452 = vpop.xlane.xlu0 %451
    %453 = vmax.xlane.f32.xlu0 %v446
    %v454 = vpop.xlane.xlu0 %453
    %v455 = vsub.f32 %v443, %v452
    %v456 = vsub.f32 %v446, %v454
    %v457 = vmul.f32 %v455, 1.442695
    %v458 = vpow.pop %v457
    %v459 = vmul.f32 %v456, 1.442695
    %v460 = vpow.pop %v459
    %461 = vadd.xlane.f32.xlu0 %v458
    %v462 = vpop.xlane.xlu0 %461
    %463 = vadd.xlane.f32.xlu0 %v460
    %v464 = vpop.xlane.xlu0 %463
    %v465 = vrcp.pop %v462
    %v466 = vrcp.pop %v464
    %v467 = vmul.f32 %v458, %v465
    %v468 = vmul.f32 %v460, %v466
    %469 = vst [vmem:[#allocation4] sm:$0xff] %v467
    %470 = vst [vmem:[#allocation4 + $0x8] sm:$0xff] %v468
    // Predicated region
    $region30: #{classifier_forward.1} parent=1 // pred_check
      _
    $region31: #{classifier_forward.1} parent=1 // pred_check_branch
      %472 = sbr.rel (0) target = $region33
    $region32: #{classifier_forward.1} parent=1 // pred_region
      %s474 = ssub.s32 256, 256
      %475 = vsyncadd [#allocation3], %s474
      %s476 = sshll.u32 [#allocation2], 4
      %s477 = int_to_ptr.vmem [resolvable:$true] %s476
      %482 = dma.vmem_to_hbm [thread:$0]  %s477, 256, %s7, [#allocation3], 128, 128, 8
    $region33: #{classifier_forward.1} parent=1 // pred_fallthru
      _
    // Predicated region
    $region34: #{classifier_forward.1} parent=1 // pred_check
      _
    $region35: #{classifier_forward.1} parent=1 // pred_check_branch
      %484 = sbr.rel (0) target = $region37
    $region36: #{classifier_forward.1} parent=1 // pred_region
      %s486 = ssub.s32 256, 256
      %487 = vsyncadd [#allocation5], %s486
      %s488 = sshll.u32 [#allocation4], 4
      %s489 = int_to_ptr.vmem [resolvable:$true] %s488
      %494 = dma.vmem_to_hbm [thread:$0]  %s489, 256, %s8, [#allocation5], 128, 128, 8
    $region37: #{classifier_forward.1} parent=1 // pred_fallthru
      _
    // Predicated region
    $region38: #{classifier_forward.1} parent=1 // pred_check
      _
    $region39: #{classifier_forward.1} parent=1 // pred_check_branch
      %496 = sbr.rel (0) target = $region41
    $region40: #{classifier_forward.1} parent=1 // pred_region
      %497 = dma.done [#allocation3], 256
    $region41: #{classifier_forward.1} parent=1 // pred_fallthru
      _
    // Predicated region
    $region42: #{classifier_forward.1} parent=1 // pred_check
      _
    $region43: #{classifier_forward.1} parent=1 // pred_check_branch
      %499 = sbr.rel (0) target = $region45
    $region44: #{classifier_forward.1} parent=1 // pred_region
      %500 = dma.done [#allocation5], 256
    $region45: #{classifier_forward.1} parent=1 // pred_fallthru
      _
    %501 = vsyncpa [#allocation3], 1
    %502 = vsyncpa [#allocation5], 1

</llo_original>
